<compile_context>
chip_gen: v7x
topology: tpu7x:2x2x1
jax: 0.10.0
libtpu: 0.0.40
codegen_flags: <defaults>
</compile_context>

<pallas_src>
import math
from functools import partial

import jax
import jax.numpy as jnp
from jax.experimental import pallas as pl
from jax.experimental.pallas import tpu as pltpu

EPS = 1e-6
LANES = 128


def _round_up(a: int, b: int) -> int:
    return ((a + b - 1) // b) * b


def _ln_kernel(alpha_ref, bias_ref, x_ref, o_ref, *, h):
    """Unpacked path: each physical row of the (TR, H) tile is one logical row."""
    # Pass 1: row means with f32 accumulation (f32 copy not kept live).
    mean = jnp.sum(x_ref[...].astype(jnp.float32), axis=-1, keepdims=True) * (1.0 / h)
    # Pass 2 (cheap VMEM re-read): centered values -> unbiased variance -> output.
    d = x_ref[...].astype(jnp.float32) - mean
    var = jnp.sum(d * d, axis=-1, keepdims=True) * (1.0 / (h - 1))
    # One exact reciprocal per row, hoisted off the per-element path.
    scale = alpha_ref[0] * pl.reciprocal(jnp.sqrt(var) + EPS, approx=False)
    o_ref[...] = (d * scale + bias_ref[0]).astype(o_ref.dtype)


def _ln_packed_kernel(alpha_ref, bias_ref, seg_ref, x_ref, o_ref, *, h):
    """Lane-packed path: k = 128 // h logical rows folded per physical row.

    seg_ref is a (W, W) 0/1 block-diagonal matrix; x @ seg gives every lane the
    sum over its own h-wide segment, so all intermediates stay lane-dense and
    the stores are full-128-lane unmasked writes.
    """
    seg = seg_ref[...]
    mean = jnp.dot(x_ref[...].astype(jnp.float32), seg,
                   preferred_element_type=jnp.float32) * (1.0 / h)
    d = x_ref[...].astype(jnp.float32) - mean
    var = jnp.dot(d * d, seg, preferred_element_type=jnp.float32) * (1.0 / (h - 1))
    scale = alpha_ref[0] * pl.reciprocal(jnp.sqrt(var) + EPS, approx=False)
    o_ref[...] = (d * scale + bias_ref[0]).astype(o_ref.dtype)


def layer_normalization(x, alpha, bias, *,
                        target_tile_bytes=None, vmem_limit_bytes=None):
    """x: (..., H). alpha, bias: shape (1,) scalars. Returns same shape/dtype as x."""
    orig_shape = x.shape
    h = int(orig_shape[-1])
    alpha_s = jnp.asarray(alpha, jnp.float32).reshape(-1)[:1]
    bias_s = jnp.asarray(bias, jnp.float32).reshape(-1)[:1]

    if h < 2:
        # torch.std over a single element is NaN (Bessel); match without a kernel.
        xf = x.astype(jnp.float32)
        std = jnp.full_like(xf, jnp.nan)
        return (alpha_s[0] * (xf - xf) / (std + EPS) + bias_s[0]).astype(x.dtype)

    rows = int(math.prod(orig_shape[:-1]))

    # Chip-aware VMEM sizing (v7x: 64 MiB/TC; v5e/v6e: 128 MiB).
    try:
        vmem_cap = int(pltpu.get_tpu_info().vmem_capacity_bytes)
    except Exception:
        vmem_cap = 64 << 20  # conservative (v7x) fallback
    if target_tile_bytes is None:
        target_tile_bytes = (8 << 20) if vmem_cap >= (128 << 20) else (4 << 20)
    if vmem_limit_bytes is None:
        vmem_limit_bytes = (64 << 20) if vmem_cap >= (128 << 20) else (32 << 20)

    itemsize = int(jnp.dtype(x.dtype).itemsize)
    sublane = max(8, 32 // max(itemsize, 1))   # 8 f32 / 16 bf16 / 32 int8

    # Lane-dense repack for narrow hidden dims.
    k = 1
    if h < LANES and LANES % h == 0 and rows % (LANES // h) == 0:
        k = LANES // h
    prows = rows // k
    width = h * k
    x2 = x.reshape(prows, width)

    # Rows per grid step: fill the VMEM budget, stay sublane-aligned, and keep
    # >= ~8 grid steps when rows allow so each v7x TensorCore still pipelines.
    row_bytes = width * itemsize
    tr = (int(target_tile_bytes) // max(row_bytes, 1)) // sublane * sublane
    tr = max(tr, sublane)
    tr = min(tr, max(sublane, _round_up(pl.cdiv(prows, 8), sublane)))
    grid = (pl.cdiv(prows, tr),)

    # Ensure double-buffered in/out tiles plus the centered f32 tile fit.
    tile_bytes = tr * row_bytes
    needed = 4 * tile_bytes + tr * width * 4 + (2 << 20)
    vmem_limit_bytes = int(max(vmem_limit_bytes, min(needed, (3 * vmem_cap) // 4)))

    smem_spec = pl.BlockSpec(memory_space=pltpu.MemorySpace.SMEM)
    tile_spec = pl.BlockSpec((tr, width), lambda i: (i, 0))

    if k > 1:
        lane = jnp.arange(width)
        seg = (lane[:, None] // h == lane[None, :] // h).astype(jnp.float32)
        kernel = partial(_ln_packed_kernel, h=h)
        in_specs = [smem_spec, smem_spec,
                    pl.BlockSpec((width, width), lambda i: (0, 0)),
                    tile_spec]
        operands = (alpha_s, bias_s, seg, x2)
    else:
        kernel = partial(_ln_kernel, h=h)
        in_specs = [smem_spec, smem_spec, tile_spec]
        operands = (alpha_s, bias_s, x2)

    out2 = pl.pallas_call(
        kernel,
        out_shape=jax.ShapeDtypeStruct((prows, width), x.dtype),
        grid=grid,
        in_specs=in_specs,
        out_specs=pl.BlockSpec((tr, width), lambda i: (i, 0)),
        compiler_params=pltpu.CompilerParams(
            dimension_semantics=("parallel",),
            vmem_limit_bytes=vmem_limit_bytes,
        ),
    )(*operands)

    return out2.reshape(orig_shape)


def _reference(x, alpha, bias):
    xf = x.astype(jnp.float32)
    mean = jnp.mean(xf, axis=-1, keepdims=True)
    var = jnp.sum((xf - mean) ** 2, axis=-1, keepdims=True) / (xf.shape[-1] - 1)
    std = jnp.sqrt(var)
    return (alpha[0] * (xf - mean) / (std + EPS) + bias[0]).astype(x.dtype)


if __name__ == "__main__":
    key = jax.random.PRNGKey(0)
    batch, seq, hidden = 2, 8, 32
    x = jax.random.normal(key, (batch, seq, hidden), dtype=jnp.float32)

    # Deterministic parameter init, matching nn.Parameter(torch.ones(1)/zeros(1)).
    alpha = jnp.ones((1,), dtype=jnp.float32)
    bias = jnp.zeros((1,), dtype=jnp.float32)

    out = jax.block_until_ready(layer_normalization(x, alpha, bias))

    ref = _reference(x, alpha, bias)
    assert out.shape == x.shape and out.dtype == x.dtype
    assert jnp.allclose(out, ref, atol=1e-5, rtol=1e-5), \
        float(jnp.max(jnp.abs(out.astype(jnp.float32) - ref.astype(jnp.float32))))

    print("KERNEL_OK")
</pallas_src>

<mosaic_0001>
module attributes {stable_mosaic.version = 11 : i64} {
  func.func @_ln_packed_kernel(%arg0: i32, %arg1: memref<1xf32, #tpu.memory_space<smem>>, %arg2: memref<1xf32, #tpu.memory_space<smem>>, %arg3: memref<128x128xf32, #tpu.memory_space<vmem>>, %arg4: memref<8x128xf32, #tpu.memory_space<vmem>>, %arg5: memref<8x128xf32, #tpu.memory_space<vmem>>) attributes {dimension_semantics = [#tpu.dimension_semantics<parallel>], iteration_bounds = array<i64: 1>, scalar_prefetch = 0 : i64, scratch_operands = 0 : i64, tpu.core_type = #tpu.core_type<tc>, window_params = [{transform_indices = @transform_0, window_bounds = array<i64: 1>}, {transform_indices = @transform_1, window_bounds = array<i64: 1>}, {pipeline_mode = #tpu.pipeline_mode<synchronous>, transform_indices = @transform_2, window_bounds = array<i64: 128, 128>}, {transform_indices = @transform_3, window_bounds = array<i64: 8, 128>}, {transform_indices = @transform_4, window_bounds = array<i64: 8, 128>}]} {
    %c0 = arith.constant 0 : index
    %c0_0 = arith.constant 0 : index
    %0 = vector.load %arg3[%c0, %c0_0] : memref<128x128xf32, #tpu.memory_space<vmem>>, vector<128x128xf32>
    %c0_1 = arith.constant 0 : index
    %c0_2 = arith.constant 0 : index
    %1 = vector.load %arg4[%c0_1, %c0_2] : memref<8x128xf32, #tpu.memory_space<vmem>>, vector<8x128xf32>
    %cst = arith.constant dense<0.000000e+00> : vector<8x128xf32>
    %2 = tpu.matmul %1, %0, %cst {dimension_numbers = #tpu.dot_dimension_numbers<[1], [0], [0], [1], [0, 0, 1, 1], [], []>} : vector<8x128xf32>, vector<128x128xf32>, vector<8x128xf32> -> vector<8x128xf32>
    %cst_3 = arith.constant 3.125000e-02 : f32
    %3 = vector.broadcast %cst_3 : f32 to vector<8x128xf32>
    %4 = arith.mulf %2, %3 : vector<8x128xf32>
    %c0_4 = arith.constant 0 : index
    %c0_5 = arith.constant 0 : index
    %5 = vector.load %arg4[%c0_4, %c0_5] : memref<8x128xf32, #tpu.memory_space<vmem>>, vector<8x128xf32>
    %6 = arith.subf %5, %4 : vector<8x128xf32>
    %7 = arith.mulf %6, %6 : vector<8x128xf32>
    %cst_6 = arith.constant dense<0.000000e+00> : vector<8x128xf32>
    %8 = tpu.matmul %7, %0, %cst_6 {dimension_numbers = #tpu.dot_dimension_numbers<[1], [0], [0], [1], [0, 0, 1, 1], [], []>} : vector<8x128xf32>, vector<128x128xf32>, vector<8x128xf32> -> vector<8x128xf32>
    %cst_7 = arith.constant 0.0322580636 : f32
    %9 = vector.broadcast %cst_7 : f32 to vector<8x128xf32>
    %10 = arith.mulf %8, %9 : vector<8x128xf32>
    %c0_8 = arith.constant 0 : index
    %11 = memref.load %arg1[%c0_8] : memref<1xf32, #tpu.memory_space<smem>>
    %12 = math.sqrt %10 : vector<8x128xf32>
    %cst_9 = arith.constant 9.99999997E-7 : f32
    %13 = vector.broadcast %cst_9 : f32 to vector<8x128xf32>
    %14 = arith.addf %12, %13 : vector<8x128xf32>
    %15 = tpu.reciprocal %14 : vector<8x128xf32> -> vector<8x128xf32>
    %16 = vector.broadcast %11 : f32 to vector<8x128xf32>
    %17 = arith.mulf %16, %15 : vector<8x128xf32>
    %18 = arith.mulf %6, %17 : vector<8x128xf32>
    %c0_10 = arith.constant 0 : index
    %19 = memref.load %arg2[%c0_10] : memref<1xf32, #tpu.memory_space<smem>>
    %20 = vector.broadcast %19 : f32 to vector<8x128xf32>
    %21 = arith.addf %18, %20 : vector<8x128xf32>
    %c0_11 = arith.constant 0 : index
    %c0_12 = arith.constant 0 : index
    %22 = vector.load %arg5[%c0_11, %c0_12] : memref<8x128xf32, #tpu.memory_space<vmem>>, vector<8x128xf32>
    tpu.vector_store %arg5[%c0_11, %c0_12], %21 {strides = array<i32>} : memref<8x128xf32, #tpu.memory_space<vmem>>, vector<8x128xf32>,
    return
  }
  func.func @transform_0(%arg0: i32) -> i32 {
    %c0_i32 = arith.constant 0 : i32
    %c0_i32_0 = arith.constant 0 : i32
    return %c0_i32 : i32
  }
  func.func @transform_1(%arg0: i32) -> i32 {
    %c0_i32 = arith.constant 0 : i32
    %c0_i32_0 = arith.constant 0 : i32
    return %c0_i32 : i32
  }
  func.func @transform_2(%arg0: i32) -> (i32, i32) {
    %c0_i32 = arith.constant 0 : i32
    %c0_i32_0 = arith.constant 0 : i32
    %c0_i32_1 = arith.constant 0 : i32
    return %c0_i32, %c0_i32_0 : i32, i32
  }
  func.func @transform_3(%arg0: i32) -> (i32, i32) {
    %c0_i32 = arith.constant 0 : i32
    %c0_i32_0 = arith.constant 0 : i32
    return %arg0, %c0_i32 : i32, i32
  }
  func.func @transform_4(%arg0: i32) -> (i32, i32) {
    %c0_i32 = arith.constant 0 : i32
    %c0_i32_0 = arith.constant 0 : i32
    return %arg0, %c0_i32 : i32, i32
  }
}

</mosaic_0001>

<llo_original>
// kernel: tpu_custom_call.1
$region0: #{tpu_custom_call.1}
  #allocation0 [shape = 'u32[]', space=smem, size = 0x4, offset = 0x4, fixed_abs, tag = 'smem constant byte address 0x4 - core index']
  #allocation1 [shape = 'u32[144,128]{1,0:T(1,128)}', space=vmem, size = 0x12000, scoped, tag = 'internal scratch']
  #allocation2 [shape = 'f32[1]{0:T(128)S(6)}', space=smem, size = 0x200, scoped, tag = 'scoped memory for tpu_custom_call.1']
  #allocation3 [shape = 'f32[1]{0:T(128)S(6)}', space=smem, size = 0x200, scoped, tag = 'scoped memory for tpu_custom_call.1']
  %s0 = inlined_call_operand.<no memory space> [shape: f32[1], index: 0, kind: input, shape index: {}]
  %s1 = inlined_call_operand.<no memory space> [shape: f32[1], index: 1, kind: input, shape index: {}]
  %s2 = inlined_call_operand.hbm [shape: f32[128,128], index: 2, kind: input, shape index: {}]
  %s3 = inlined_call_operand.vmem [shape: f32[4,128], index: 3, kind: input, shape index: {}]
  %s4 = inlined_call_operand.hbm [shape: f32[4,128], index: 4, kind: output, shape index: {}]
  %s5 = sld [smem:[#allocation0]]
  $region30: #{tpu_custom_call.1} parent=0
    _
  %s7 = ssub.s32 1, %s5
  %s8 = scalar_select 0, %s7, %s5
  %9 = sst [smem:[#allocation2]] %s0
  %10 = sst [smem:[#allocation3]] %s1
  $region1: #{tpu_custom_call.1} parent=0
    #allocation4 [shape = 'u8[65536]{0}', space=vmem, size = 0x10000, scoped, tag = 'input window, operand 2, single buffered']
    #allocation5 [shape = 's32[1]{0}', space=sflag, size = 0x4, scoped, tag = 'scoped memory for tpu_custom_call.1']
    #allocation6 [shape = 's32[1]{0}', space=sflag, size = 0x4, scoped, tag = 'scoped memory for tpu_custom_call.1']
    #allocation7 [shape = 'u8[4096]{0}', space=vmem, size = 0x1000, scoped, tag = 'output window, operand 0, single buffered']
    %11 = vsyncpa [#allocation5], 0
    %12 = vsyncpa [#allocation6], 0
    // Predicated region
    $region2: #{tpu_custom_call.1} parent=1 // pred_check
      _
    $region3: #{tpu_custom_call.1} parent=1 // pred_check_branch
      %14 = sbr.rel (0) target = $region5
    $region4: #{tpu_custom_call.1} parent=1 // pred_region
      _
    $region5: #{tpu_custom_call.1} parent=1 // pred_fallthru
      _
    // Predicated region
    $region6: #{tpu_custom_call.1} parent=1 // pred_check
      _
    $region7: #{tpu_custom_call.1} parent=1 // pred_check_branch
      %16 = sbr.rel (0) target = $region9
    $region8: #{tpu_custom_call.1} parent=1 // pred_region
      _
    $region9: #{tpu_custom_call.1} parent=1 // pred_fallthru
      _
    // Predicated region
    $region10: #{tpu_custom_call.1} parent=1 // pred_check
      _
    $region11: #{tpu_custom_call.1} parent=1 // pred_check_branch
      %18 = sbr.rel (0) target = $region13
    $region12: #{tpu_custom_call.1} parent=1 // pred_region
      %s20 = ssub.s32 2048, 2048
      %21 = vsyncadd [#allocation5], %s20
      %s22 = sshll.u32 [#allocation4], 4
      %s23 = int_to_ptr.vmem [resolvable:$true] %s22
      %28 = dma.hbm_to_vmem [thread:$0]  %s2, 2048, %s23, [#allocation5], 128, 128, 8
    $region13: #{tpu_custom_call.1} parent=1 // pred_fallthru
      _
    // Predicated region
    $region14: #{tpu_custom_call.1} parent=1 // pred_check
      _
    $region15: #{tpu_custom_call.1} parent=1 // pred_check_branch
      %30 = sbr.rel (0) target = $region17
    $region16: #{tpu_custom_call.1} parent=1 // pred_region
      _
    $region17: #{tpu_custom_call.1} parent=1 // pred_fallthru
      _
    // Predicated region
    $region18: #{tpu_custom_call.1} parent=1 // pred_check
      _
    $region19: #{tpu_custom_call.1} parent=1 // pred_check_branch
      %32 = sbr.rel (0) target = $region21
    $region20: #{tpu_custom_call.1} parent=1 // pred_region
      %33 = dma.done [#allocation5], 2048
    $region21: #{tpu_custom_call.1} parent=1 // pred_fallthru
      _
    %v34 = vld [vmem:[#allocation4] sm:$0xff]
    %v35 = vld [vmem:[#allocation4 + $0x8] sm:$0xff]
    %v36 = vld [vmem:[#allocation4 + $0x10] sm:$0xff]
    %v37 = vld [vmem:[#allocation4 + $0x18] sm:$0xff]
    %v38 = vld [vmem:[#allocation4 + $0x20] sm:$0xff]
    %v39 = vld [vmem:[#allocation4 + $0x28] sm:$0xff]
    %v40 = vld [vmem:[#allocation4 + $0x30] sm:$0xff]
    %v41 = vld [vmem:[#allocation4 + $0x38] sm:$0xff]
    %v42 = vld [vmem:[#allocation4 + $0x40] sm:$0xff]
    %v43 = vld [vmem:[#allocation4 + $0x48] sm:$0xff]
    %v44 = vld [vmem:[#allocation4 + $0x50] sm:$0xff]
    %v45 = vld [vmem:[#allocation4 + $0x58] sm:$0xff]
    %v46 = vld [vmem:[#allocation4 + $0x60] sm:$0xff]
    %v47 = vld [vmem:[#allocation4 + $0x68] sm:$0xff]
    %v48 = vld [vmem:[#allocation4 + $0x70] sm:$0xff]
    %v49 = vld [vmem:[#allocation4 + $0x78] sm:$0xff]
    %v50 = vld [vmem:[%s3] sm:$0xff]
    %51 = vmatprep.subr.mxu0 0.0
    %52 = vmatpush1.msra.mxu0 %v34
    %53 = vmatprep.subr.mxu0 0.0
    %54 = vmatpush1.msra.mxu0 %v35
    %55 = vmatprep.subr.mxu0 0.0
    %56 = vmatpush1.msra.mxu0 %v36
    %57 = vmatprep.subr.mxu0 0.0
    %58 = vmatpush1.msra.mxu0 %v37
    %59 = vmatprep.subr.mxu0 0.0
    %60 = vmatpush1.msra.mxu0 %v38
    %61 = vmatprep.subr.mxu0 0.0
    %62 = vmatpush1.msra.mxu0 %v39
    %63 = vmatprep.subr.mxu0 0.0
    %64 = vmatpush1.msra.mxu0 %v40
    %65 = vmatprep.subr.mxu0 0.0
    %66 = vmatpush1.msra.mxu0 %v41
    %67 = vmatprep.subr.mxu0 0.0
    %68 = vmatpush1.msra.mxu0 %v42
    %69 = vmatprep.subr.mxu0 0.0
    %70 = vmatpush1.msra.mxu0 %v43
    %71 = vmatprep.subr.mxu0 0.0
    %72 = vmatpush1.msra.mxu0 %v44
    %73 = vmatprep.subr.mxu0 0.0
    %74 = vmatpush1.msra.mxu0 %v45
    %75 = vmatprep.subr.mxu0 0.0
    %76 = vmatpush1.msra.mxu0 %v46
    %77 = vmatprep.subr.mxu0 0.0
    %78 = vmatpush1.msra.mxu0 %v47
    %79 = vmatprep.subr.mxu0 0.0
    %80 = vmatpush1.msra.mxu0 %v48
    %81 = vmatprep.subr.mxu0 0.0
    %82 = vmatpush1.msra.mxu0 %v49
    %83 = vmatprep.subr.mxu0 0.0
    %84 = vmatpush1.msra.mxu0 0.0
    %85 = vmatprep.subr.mxu0 0.0
    %86 = vmatpush1.msra.mxu0 0.0
    %87 = vmatprep.subr.mxu0 0.0
    %88 = vmatpush1.msra.mxu0 0.0
    %89 = vmatprep.subr.mxu0 0.0
    %90 = vmatpush1.msra.mxu0 0.0
    %91 = vmatprep.subr.mxu0 0.0
    %92 = vmatpush1.msra.mxu0 0.0
    %93 = vmatprep.subr.mxu0 0.0
    %94 = vmatpush1.msra.mxu0 0.0
    %95 = vmatprep.subr.mxu0 0.0
    %96 = vmatpush1.msra.mxu0 0.0
    %97 = vmatprep.subr.mxu0 0.0
    %98 = vmatpush1.msra.mxu0 0.0
    %99 = vmatprep.subr.mxu0 0.0
    %100 = vmatpush1.msra.mxu0 0.0
    %101 = vmatprep.subr.mxu0 0.0
    %102 = vmatpush1.msra.mxu0 0.0
    %103 = vmatprep.subr.mxu0 0.0
    %104 = vmatpush1.msra.mxu0 0.0
    %105 = vmatprep.subr.mxu0 0.0
    %106 = vmatpush1.msra.mxu0 0.0
    %107 = vmatprep.subr.mxu0 0.0
    %108 = vmatpush1.msra.mxu0 0.0
    %109 = vmatprep.subr.mxu0 0.0
    %110 = vmatpush1.msra.mxu0 0.0
    %111 = vmatprep.subr.mxu0 0.0
    %112 = vmatpush1.msra.mxu0 0.0
    %113 = vmatprep.subr.mxu0 0.0
    %114 = vmatpush1.msra.mxu0 0.0
    %115 = vmatprep.mubr.f32.mxu0 0.0
    %116 = vmatmul.mubr.f32.gmra.mrb[0].mxu0 %v50
    %v117 = vpop.f32.mrb[0].mxu0
    %v118 = vadd.f32 0.0, %v117
    %v119 = vpop.f32.mrb[0].mxu0
    %120 = vdwg.mxu0
    %v121 = vmul.f32 %v118, 0.03125
    %v122 = vsub.f32 %v50, %v121
    %v123 = vmul.f32 %v122, %v122
    %124 = vmatprep.subr.mxu0 0.0
    %125 = vmatpush1.msra.mxu0 %v34
    %126 = vmatprep.subr.mxu0 0.0
    %127 = vmatpush1.msra.mxu0 %v35
    %128 = vmatprep.subr.mxu0 0.0
    %129 = vmatpush1.msra.mxu0 %v36
    %130 = vmatprep.subr.mxu0 0.0
    %131 = vmatpush1.msra.mxu0 %v37
    %132 = vmatprep.subr.mxu0 0.0
    %133 = vmatpush1.msra.mxu0 %v38
    %134 = vmatprep.subr.mxu0 0.0
    %135 = vmatpush1.msra.mxu0 %v39
    %136 = vmatprep.subr.mxu0 0.0
    %137 = vmatpush1.msra.mxu0 %v40
    %138 = vmatprep.subr.mxu0 0.0
    %139 = vmatpush1.msra.mxu0 %v41
    %140 = vmatprep.subr.mxu0 0.0
    %141 = vmatpush1.msra.mxu0 %v42
    %142 = vmatprep.subr.mxu0 0.0
    %143 = vmatpush1.msra.mxu0 %v43
    %144 = vmatprep.subr.mxu0 0.0
    %145 = vmatpush1.msra.mxu0 %v44
    %146 = vmatprep.subr.mxu0 0.0
    %147 = vmatpush1.msra.mxu0 %v45
    %148 = vmatprep.subr.mxu0 0.0
    %149 = vmatpush1.msra.mxu0 %v46
    %150 = vmatprep.subr.mxu0 0.0
    %151 = vmatpush1.msra.mxu0 %v47
    %152 = vmatprep.subr.mxu0 0.0
    %153 = vmatpush1.msra.mxu0 %v48
    %154 = vmatprep.subr.mxu0 0.0
    %155 = vmatpush1.msra.mxu0 %v49
    %156 = vmatprep.subr.mxu0 0.0
    %157 = vmatpush1.msra.mxu0 0.0
    %158 = vmatprep.subr.mxu0 0.0
    %159 = vmatpush1.msra.mxu0 0.0
    %160 = vmatprep.subr.mxu0 0.0
    %161 = vmatpush1.msra.mxu0 0.0
    %162 = vmatprep.subr.mxu0 0.0
    %163 = vmatpush1.msra.mxu0 0.0
    %164 = vmatprep.subr.mxu0 0.0
    %165 = vmatpush1.msra.mxu0 0.0
    %166 = vmatprep.subr.mxu0 0.0
    %167 = vmatpush1.msra.mxu0 0.0
    %168 = vmatprep.subr.mxu0 0.0
    %169 = vmatpush1.msra.mxu0 0.0
    %170 = vmatprep.subr.mxu0 0.0
    %171 = vmatpush1.msra.mxu0 0.0
    %172 = vmatprep.subr.mxu0 0.0
    %173 = vmatpush1.msra.mxu0 0.0
    %174 = vmatprep.subr.mxu0 0.0
    %175 = vmatpush1.msra.mxu0 0.0
    %176 = vmatprep.subr.mxu0 0.0
    %177 = vmatpush1.msra.mxu0 0.0
    %178 = vmatprep.subr.mxu0 0.0
    %179 = vmatpush1.msra.mxu0 0.0
    %180 = vmatprep.subr.mxu0 0.0
    %181 = vmatpush1.msra.mxu0 0.0
    %182 = vmatprep.subr.mxu0 0.0
    %183 = vmatpush1.msra.mxu0 0.0
    %184 = vmatprep.subr.mxu0 0.0
    %185 = vmatpush1.msra.mxu0 0.0
    %186 = vmatprep.subr.mxu0 0.0
    %187 = vmatpush1.msra.mxu0 0.0
    %188 = vmatprep.mubr.f32.mxu0 0.0
    %189 = vmatmul.mubr.f32.gmra.mrb[0].mxu0 %v123
    %v190 = vpop.f32.mrb[0].mxu0
    %v191 = vadd.f32 0.0, %v190
    %v192 = vpop.f32.mrb[0].mxu0
    %193 = vdwg.mxu0
    %v194 = vmul.f32 %v191, 0.032258064
    %s195 = sld [smem:[#allocation2]]
    %v196 = vrsqrt.pop %v194
    %v197 = vmul.f32 %v194, %v196
    %vm198 = vcmp.eq.f32.partialorder %v194, inf
    %v199 = vsel %vm198, %v194, %v197
    %vm200 = vcmp.eq.f32.partialorder %v194, 0.0
    %v201 = vand.u32 %v194, 2147483648
    %v202 = vsel %vm200, %v201, %v199
    %v203 = vadd.f32 %v202, 1e-06
    %v204 = vrcp.pop %v203
    %v205 = vstv %s195
    %v206 = vmul.f32 %v205, %v204
    %v207 = vmul.f32 %v122, %v206
    %s208 = sld [smem:[#allocation3]]
    %v209 = vstv %s208
    %v210 = vadd.f32 %v207, %v209
    %211 = vst [vmem:[#allocation7] sm:$0xff] %v210
    // Predicated region
    $region22: #{tpu_custom_call.1} parent=1 // pred_check
      _
    $region23: #{tpu_custom_call.1} parent=1 // pred_check_branch
      %213 = sbr.rel (0) target = $region25
    $region24: #{tpu_custom_call.1} parent=1 // pred_region
      %s215 = ssub.s32 128, 64
      %216 = vsyncadd [#allocation6], %s215
      %s217 = sshll.u32 [#allocation7], 4
      %s218 = int_to_ptr.vmem [resolvable:$true] %s217
      %223 = dma.vmem_to_hbm [thread:$0]  %s218, 64, %s4, [#allocation6], 64, 64, 4
    $region25: #{tpu_custom_call.1} parent=1 // pred_fallthru
      _
    // Predicated region
    $region26: #{tpu_custom_call.1} parent=1 // pred_check
      _
    $region27: #{tpu_custom_call.1} parent=1 // pred_check_branch
      %225 = sbr.rel (0) target = $region29
    $region28: #{tpu_custom_call.1} parent=1 // pred_region
      %226 = dma.done [#allocation6], 128
    $region29: #{tpu_custom_call.1} parent=1 // pred_fallthru
      _
    %227 = vsyncpa [#allocation5], 1
    %228 = vsyncpa [#allocation6], 1

</llo_original>
